<compile_context>
chip_gen: v7x
topology: tpu7x:2x2x1
jax: 0.10.0
libtpu: 0.0.40
codegen_flags: <defaults>
</compile_context>

<pallas_src>
import functools

import jax
import jax.numpy as jnp
from jax.experimental import pallas as pl
from jax.experimental.pallas import tpu as pltpu

HIDDEN = 64            # per-head hidden width (as in the PyTorch module)
FUSED_H = 2 * HIDDEN   # fused hidden width (actor | critic) = 128 lanes
OUT_LANES = 128        # lane-dense output slab width
TM_MAX = 2048          # large-batch tile (amortizes ~0.35 us per grid step)


def _round_up(x, m):
    return ((x + m - 1) // m) * m


def _pick_tile(B):
    """Batch-tile size. Large tiles amortize per-step cost; >=2 grid steps for
    medium-large batches so the 'parallel' axis can shard across v7x's 2 TCs."""
    if B <= 1024:
        # Small/medium batch: one tile. These calls are dispatch-bound anyway.
        return _round_up(B, 8)
    if B >= 2 * TM_MAX:
        return TM_MAX
    # Medium-large: split into (at least) two chunky tiles.
    return _round_up(pl.cdiv(B, 2), 256)


# ----------------------------------------------------------------------------
# Pallas kernel: fused actor+critic forward for one (TM, S) batch tile.
# Output slab (TM, 128): lanes [0, A) = actor log-probs, lane A = critic value.
# ----------------------------------------------------------------------------
def _actor_critic_kernel(x_ref, w1_ref, b1_ref, w2_ref, b2_ref, w3_ref, b3_ref,
                         out_ref, *, action_dims):
    # x arrives in its native dtype (f32); cast to the weights' compute dtype
    # (bf16) in-register — the VPU cast hides under the tile DMA and removes
    # the wrapper-side cast copy.
    x = x_ref[...].astype(w1_ref.dtype)                # (TM, S) bf16

    # Layer 1: (TM, S) @ (S, 128) -> fused actor|critic hidden, f32 accumulate.
    h = jnp.tanh(
        jnp.dot(x, w1_ref[...], preferred_element_type=jnp.float32)
        + b1_ref[...]
    )
    # Layer 2: block-diagonal (128, 128) keeps the two heads independent.
    h = jnp.tanh(
        jnp.dot(h.astype(w2_ref.dtype), w2_ref[...],
                preferred_element_type=jnp.float32)
        + b2_ref[...]
    )
    # Layer 3: one (128, 128) matmul -> lanes [0,A) actor logits, lane A value.
    y = (
        jnp.dot(h.astype(w3_ref.dtype), w3_ref[...],
                preferred_element_type=jnp.float32)
        + b3_ref[...]
    )                                                  # (TM, 128) f32

    # Numerically-stable log-softmax restricted to the actor-logit lanes.
    lane = jax.lax.broadcasted_iota(jnp.int32, y.shape, dimension=1)
    is_logit = lane < action_dims
    masked = jnp.where(is_logit, y, jnp.float32(-1e30))
    m = jnp.max(masked, axis=-1, keepdims=True)
    e = jnp.where(is_logit, jnp.exp(masked - m), 0.0)
    logz = m + jnp.log(jnp.sum(e, axis=-1, keepdims=True))

    # Single full-width (lane-dense) store: log-probs where actor lanes,
    # raw y elsewhere (lane A = critic value, remaining lanes = padding).
    out_ref[...] = jnp.where(is_logit, y - logz, y).astype(out_ref.dtype)


# ----------------------------------------------------------------------------
# Wrapper: cdiv grid over the batch, weights resident, lane-dense output slab.
# ----------------------------------------------------------------------------
@functools.partial(jax.jit, static_argnames=("action_dims", "out_dtype"))
def actor_critic_forward(x, params, action_dims, out_dtype=jnp.bfloat16):
    """Returns (log_probs (B, A) f32, values (B, 1) f32)."""
    B, S = x.shape
    TM = _pick_tile(B)
    grid = (pl.cdiv(B, TM),)     # last tile may be partial; OOB rows are
                                 # row-local garbage and never read back.

    kernel = functools.partial(_actor_critic_kernel, action_dims=action_dims)
    const = lambda i: (0, 0)     # weights/biases stay VMEM-resident across steps

    out = pl.pallas_call(
        kernel,
        out_shape=jax.ShapeDtypeStruct((B, OUT_LANES), out_dtype),
        grid_spec=pltpu.PrefetchScalarGridSpec(
            num_scalar_prefetch=0,
            grid=grid,
            in_specs=[
                pl.BlockSpec((TM, S), lambda i: (i, 0)),        # x tile (native f32)
                pl.BlockSpec((S, FUSED_H), const),              # W1
                pl.BlockSpec((1, FUSED_H), const),              # b1
                pl.BlockSpec((FUSED_H, FUSED_H), const),        # W2
                pl.BlockSpec((1, FUSED_H), const),              # b2
                pl.BlockSpec((FUSED_H, OUT_LANES), const),      # W3
                pl.BlockSpec((1, OUT_LANES), const),            # b3
            ],
            out_specs=pl.BlockSpec((TM, OUT_LANES), lambda i: (i, 0)),
        ),
        compiler_params=pltpu.CompilerParams(
            dimension_semantics=("parallel",),       # no-op on v5e/v6e, 2x headroom on v7x
            vmem_limit_bytes=32 * 1024 * 1024,       # ample headroom even on v7x (64 MiB)
        ),
    )(x, params["w1"], params["b1"], params["w2"], params["b2"],
      params["w3"], params["b3"])

    # Tiny post-slices; cast back to f32 for downstream PPO glue.
    log_probs = out[:, :action_dims].astype(jnp.float32)
    values = out[:, action_dims:action_dims + 1].astype(jnp.float32)
    return log_probs, values


# ----------------------------------------------------------------------------
# Parameter init (nn.Linear default: U(-1/sqrt(fan_in), 1/sqrt(fan_in))) and
# one-time packing into the fused 128-wide layout.
# ----------------------------------------------------------------------------
def init_params(key, state_dims, action_dims, compute_dtype=jnp.bfloat16):
    assert action_dims + 1 <= OUT_LANES, "action_dims + 1 must fit in 128 lanes"

    def linear(k, fan_in, fan_out):
        kw, kb = jax.random.split(k)
        bound = 1.0 / jnp.sqrt(jnp.float32(fan_in))
        # stored transposed: (fan_in, fan_out) so the kernel does x @ W + b
        w = jax.random.uniform(kw, (fan_in, fan_out), jnp.float32, -bound, bound)
        b = jax.random.uniform(kb, (fan_out,), jnp.float32, -bound, bound)
        return w, b

    keys = jax.random.split(key, 6)
    aw1, ab1 = linear(keys[0], state_dims, HIDDEN)
    aw2, ab2 = linear(keys[1], HIDDEN, HIDDEN)
    aw3, ab3 = linear(keys[2], HIDDEN, action_dims)
    cw1, cb1 = linear(keys[3], state_dims, HIDDEN)
    cw2, cb2 = linear(keys[4], HIDDEN, HIDDEN)
    cw3, cb3 = linear(keys[5], HIDDEN, 1)

    # ---- pack once into the fused layout ----
    w1 = jnp.concatenate([aw1, cw1], axis=1)                     # (S, 128)
    b1 = jnp.concatenate([ab1, cb1])[None, :]                    # (1, 128)

    w2 = jnp.zeros((FUSED_H, FUSED_H), jnp.float32)              # block-diag
    w2 = w2.at[:HIDDEN, :HIDDEN].set(aw2).at[HIDDEN:, HIDDEN:].set(cw2)
    b2 = jnp.concatenate([ab2, cb2])[None, :]                    # (1, 128)

    w3 = jnp.zeros((FUSED_H, OUT_LANES), jnp.float32)
    w3 = w3.at[:HIDDEN, :action_dims].set(aw3)                   # actor head
    w3 = w3.at[HIDDEN:, action_dims].set(cw3[:, 0])              # critic head
    b3 = jnp.zeros((1, OUT_LANES), jnp.float32)
    b3 = b3.at[0, :action_dims].set(ab3).at[0, action_dims].set(cb3[0])

    packed = dict(
        w1=w1.astype(compute_dtype), b1=b1,
        w2=w2.astype(compute_dtype), b2=b2,
        w3=w3.astype(compute_dtype), b3=b3,
    )
    raw = dict(aw1=aw1, ab1=ab1, aw2=aw2, ab2=ab2, aw3=aw3, ab3=ab3,
               cw1=cw1, cb1=cb1, cw2=cw2, cb2=cb2, cw3=cw3, cb3=cb3)
    return packed, raw


# ----------------------------------------------------------------------------
# ActorCritic.act / ActorCritic.evaluate semantics (glue on kernel outputs).
# Log-probs come straight from the kernel -> no log(probs) underflow hazard.
# ----------------------------------------------------------------------------
def act(key, x, params, action_dims):
    logp_all, values = actor_critic_forward(x, params, action_dims)
    action = jax.random.categorical(key, logp_all, axis=-1)       # Categorical.sample()
    log_prob = jnp.take_along_axis(logp_all, action[:, None], axis=-1)[:, 0]
    return action, log_prob, values                               # (B,), (B,), (B,1)


def evaluate(x, action, params, action_dims):
    logp_all, values = actor_critic_forward(x, params, action_dims)
    log_prob = jnp.take_along_axis(logp_all, action[:, None], axis=-1)[:, 0]
    probs = jnp.exp(logp_all)
    entropy = -jnp.sum(probs * logp_all, axis=-1)                 # Categorical.entropy()
    state_values = jnp.squeeze(values)                            # torch.squeeze
    return log_prob, state_values, entropy


# ----------------------------------------------------------------------------
# Pure-JAX f32 reference for verification (unfused, PyTorch-equivalent math).
# ----------------------------------------------------------------------------
def reference_forward(x, r):
    h = jnp.tanh(x @ r["aw1"] + r["ab1"])
    h = jnp.tanh(h @ r["aw2"] + r["ab2"])
    probs = jax.nn.softmax(h @ r["aw3"] + r["ab3"], axis=-1)
    g = jnp.tanh(x @ r["cw1"] + r["cb1"])
    g = jnp.tanh(g @ r["cw2"] + r["cb2"])
    values = g @ r["cw3"] + r["cb3"][None, :]
    return probs, values


if __name__ == "__main__":
    B = 8
    STATE_DIMS = 32
    ACTION_DIMS = 8

    root = jax.random.PRNGKey(0)
    k_params, k_state, k_action, k_sample, k_big = jax.random.split(root, 5)

    packed, raw = init_params(k_params, STATE_DIMS, ACTION_DIMS)
    states = jax.random.normal(k_state, (B, STATE_DIMS), jnp.float32)
    actions = jax.random.randint(k_action, (B,), 0, ACTION_DIMS)

    # Fused kernel forward (default bf16 output slab).
    logp, values = jax.block_until_ready(
        actor_critic_forward(states, packed, ACTION_DIMS))
    probs = jnp.exp(logp)

    # Sanity + accuracy vs. the f32 reference (kernel uses bf16 operands with
    # f32 accumulation; tolerances are loose-but-tight-enough).
    ref_probs, ref_values = reference_forward(states, raw)
    assert probs.shape == (B, ACTION_DIMS) and values.shape == (B, 1)
    assert bool(jnp.all(jnp.isfinite(logp))) and bool(jnp.all(jnp.isfinite(values)))
    assert jnp.allclose(jnp.sum(probs, axis=-1), 1.0, atol=1e-2)
    assert jnp.allclose(probs, ref_probs, atol=2e-2, rtol=2e-2)
    assert jnp.allclose(values, ref_values, atol=5e-2, rtol=5e-2)

    # Full-precision (f32 slab) output path for ratio-sensitive PPO training.
    logp32, values32 = jax.block_until_ready(
        actor_critic_forward(states, packed, ACTION_DIMS, out_dtype=jnp.float32))
    assert jnp.allclose(jnp.exp(logp32), ref_probs, atol=2e-2, rtol=2e-2)
    assert jnp.allclose(values32, ref_values, atol=5e-2, rtol=5e-2)

    # Medium-large batch: exercises the >=2-step "parallel" grid (v7x 2-TC path).
    BIG_B = 1536
    big_states = jax.random.normal(k_big, (BIG_B, STATE_DIMS), jnp.float32)
    blogp, bvals = jax.block_until_ready(
        actor_critic_forward(big_states, packed, ACTION_DIMS))
    bref_probs, bref_values = reference_forward(big_states, raw)
    assert blogp.shape == (BIG_B, ACTION_DIMS) and bvals.shape == (BIG_B, 1)
    assert jnp.allclose(jnp.exp(blogp), bref_probs, atol=3e-2, rtol=3e-2)
    assert jnp.allclose(bvals, bref_values, atol=5e-2, rtol=5e-2)

    # Exercise act() / evaluate() semantics.
    action, log_prob, state_value = jax.block_until_ready(
        act(k_sample, states, packed, ACTION_DIMS))
    lp, sv, ent = jax.block_until_ready(
        evaluate(states, actions, packed, ACTION_DIMS))
    assert action.shape == (B,) and log_prob.shape == (B,)
    assert state_value.shape == (B, 1)
    assert lp.shape == (B,) and sv.shape == (B,) and ent.shape == (B,)
    assert bool(jnp.all(jnp.isfinite(lp))) and bool(jnp.all(jnp.isfinite(ent)))

    print("KERNEL_OK")
</pallas_src>

<mosaic_0001>
module attributes {stable_mosaic.version = 11 : i64} {
  func.func @_actor_critic_kernel(%arg0: i32, %arg1: memref<8x32xf32, #tpu.memory_space<vmem>>, %arg2: memref<32x128xbf16, #tpu.memory_space<vmem>>, %arg3: memref<1x128xf32, #tpu.memory_space<vmem>>, %arg4: memref<128x128xbf16, #tpu.memory_space<vmem>>, %arg5: memref<1x128xf32, #tpu.memory_space<vmem>>, %arg6: memref<128x128xbf16, #tpu.memory_space<vmem>>, %arg7: memref<1x128xf32, #tpu.memory_space<vmem>>, %arg8: memref<8x128xbf16, #tpu.memory_space<vmem>>) attributes {dimension_semantics = [#tpu.dimension_semantics<parallel>], iteration_bounds = array<i64: 1>, scalar_prefetch = 0 : i64, scratch_operands = 0 : i64, tpu.core_type = #tpu.core_type<tc>, window_params = [{transform_indices = @transform_0, window_bounds = array<i64: 8, 32>}, {pipeline_mode = #tpu.pipeline_mode<synchronous>, transform_indices = @transform_1, window_bounds = array<i64: 32, 128>}, {pipeline_mode = #tpu.pipeline_mode<synchronous>, transform_indices = @transform_2, window_bounds = array<i64: 1, 128>}, {pipeline_mode = #tpu.pipeline_mode<synchronous>, transform_indices = @transform_3, window_bounds = array<i64: 128, 128>}, {pipeline_mode = #tpu.pipeline_mode<synchronous>, transform_indices = @transform_4, window_bounds = array<i64: 1, 128>}, {pipeline_mode = #tpu.pipeline_mode<synchronous>, transform_indices = @transform_5, window_bounds = array<i64: 128, 128>}, {pipeline_mode = #tpu.pipeline_mode<synchronous>, transform_indices = @transform_6, window_bounds = array<i64: 1, 128>}, {transform_indices = @transform_7, window_bounds = array<i64: 8, 128>}]} {
    %c0 = arith.constant 0 : index
    %c0_0 = arith.constant 0 : index
    %0 = vector.load %arg1[%c0, %c0_0] : memref<8x32xf32, #tpu.memory_space<vmem>>, vector<8x32xf32>
    %1 = arith.truncf %0 : vector<8x32xf32> to vector<8x32xbf16>
    %c0_1 = arith.constant 0 : index
    %c0_2 = arith.constant 0 : index
    %2 = vector.load %arg2[%c0_1, %c0_2] : memref<32x128xbf16, #tpu.memory_space<vmem>>, vector<32x128xbf16>
    %cst = arith.constant dense<0.000000e+00> : vector<8x128xf32>
    %3 = tpu.matmul %1, %2, %cst {dimension_numbers = #tpu.dot_dimension_numbers<[1], [0], [0], [1], [0, 0, 1, 1], [], []>} : vector<8x32xbf16>, vector<32x128xbf16>, vector<8x128xf32> -> vector<8x128xf32>
    %c0_3 = arith.constant 0 : index
    %c0_4 = arith.constant 0 : index
    %4 = vector.load %arg3[%c0_3, %c0_4] : memref<1x128xf32, #tpu.memory_space<vmem>>, vector<1x128xf32>
    %5 = vector.broadcast %4 : vector<1x128xf32> to vector<8x128xf32>
    %6 = arith.addf %3, %5 : vector<8x128xf32>
    %7 = math.tanh %6 : vector<8x128xf32>
    %8 = arith.truncf %7 : vector<8x128xf32> to vector<8x128xbf16>
    %c0_5 = arith.constant 0 : index
    %c0_6 = arith.constant 0 : index
    %9 = vector.load %arg4[%c0_5, %c0_6] : memref<128x128xbf16, #tpu.memory_space<vmem>>, vector<128x128xbf16>
    %cst_7 = arith.constant dense<0.000000e+00> : vector<8x128xf32>
    %10 = tpu.matmul %8, %9, %cst_7 {dimension_numbers = #tpu.dot_dimension_numbers<[1], [0], [0], [1], [0, 0, 1, 1], [], []>} : vector<8x128xbf16>, vector<128x128xbf16>, vector<8x128xf32> -> vector<8x128xf32>
    %c0_8 = arith.constant 0 : index
    %c0_9 = arith.constant 0 : index
    %11 = vector.load %arg5[%c0_8, %c0_9] : memref<1x128xf32, #tpu.memory_space<vmem>>, vector<1x128xf32>
    %12 = vector.broadcast %11 : vector<1x128xf32> to vector<8x128xf32>
    %13 = arith.addf %10, %12 : vector<8x128xf32>
    %14 = math.tanh %13 : vector<8x128xf32>
    %15 = arith.truncf %14 : vector<8x128xf32> to vector<8x128xbf16>
    %c0_10 = arith.constant 0 : index
    %c0_11 = arith.constant 0 : index
    %16 = vector.load %arg6[%c0_10, %c0_11] : memref<128x128xbf16, #tpu.memory_space<vmem>>, vector<128x128xbf16>
    %cst_12 = arith.constant dense<0.000000e+00> : vector<8x128xf32>
    %17 = tpu.matmul %15, %16, %cst_12 {dimension_numbers = #tpu.dot_dimension_numbers<[1], [0], [0], [1], [0, 0, 1, 1], [], []>} : vector<8x128xbf16>, vector<128x128xbf16>, vector<8x128xf32> -> vector<8x128xf32>
    %c0_13 = arith.constant 0 : index
    %c0_14 = arith.constant 0 : index
    %18 = vector.load %arg7[%c0_13, %c0_14] : memref<1x128xf32, #tpu.memory_space<vmem>>, vector<1x128xf32>
    %19 = vector.broadcast %18 : vector<1x128xf32> to vector<8x128xf32>
    %20 = arith.addf %17, %19 : vector<8x128xf32>
    %21 = tpu.iota {dimensions = array<i32: 1>} : vector<8x128xi32>
    %c8_i32 = arith.constant 8 : i32
    %22 = vector.broadcast %c8_i32 : i32 to vector<8x128xi32>
    %23 = arith.cmpi slt, %21, %22 : vector<8x128xi32>
    %cst_15 = arith.constant -1.000000e+30 : f32
    %24 = vector.broadcast %cst_15 : f32 to vector<8x128xf32>
    %25 = arith.select %23, %20, %24 : vector<8x128xi1>, vector<8x128xf32>
    %cst_16 = arith.constant dense<0xFF800000> : vector<8xf32>
    %26 = vector.multi_reduction <maximumf>, %25, %cst_16 [1] : vector<8x128xf32> to vector<8xf32>
    %27 = vector.shape_cast %26 : vector<8xf32> to vector<8x1xf32>
    %28 = vector.broadcast %27 : vector<8x1xf32> to vector<8x128xf32>
    %29 = arith.subf %25, %28 : vector<8x128xf32>
    %30 = math.exp %29 : vector<8x128xf32>
    %cst_17 = arith.constant 0.000000e+00 : f32
    %31 = vector.broadcast %cst_17 : f32 to vector<8x128xf32>
    %32 = arith.select %23, %30, %31 : vector<8x128xi1>, vector<8x128xf32>
    %cst_18 = arith.constant dense<0.000000e+00> : vector<8xf32>
    %33 = vector.multi_reduction <add>, %32, %cst_18 [1] : vector<8x128xf32> to vector<8xf32>
    %34 = vector.shape_cast %33 : vector<8xf32> to vector<8x1xf32>
    %35 = math.log %34 : vector<8x1xf32>
    %36 = arith.addf %27, %35 : vector<8x1xf32>
    %37 = vector.broadcast %36 : vector<8x1xf32> to vector<8x128xf32>
    %38 = arith.subf %20, %37 : vector<8x128xf32>
    %39 = arith.select %23, %38, %20 : vector<8x128xi1>, vector<8x128xf32>
    %40 = arith.truncf %39 : vector<8x128xf32> to vector<8x128xbf16>
    %c0_19 = arith.constant 0 : index
    %c0_20 = arith.constant 0 : index
    %41 = vector.load %arg8[%c0_19, %c0_20] : memref<8x128xbf16, #tpu.memory_space<vmem>>, vector<8x128xbf16>
    tpu.vector_store %arg8[%c0_19, %c0_20], %40 {strides = array<i32>} : memref<8x128xbf16, #tpu.memory_space<vmem>>, vector<8x128xbf16>,
    return
  }
  func.func @transform_0(%arg0: i32) -> (i32, i32) {
    %c0_i32 = arith.constant 0 : i32
    %c0_i32_0 = arith.constant 0 : i32
    return %arg0, %c0_i32 : i32, i32
  }
  func.func @transform_1(%arg0: i32) -> (i32, i32) {
    %c0_i32 = arith.constant 0 : i32
    %c0_i32_0 = arith.constant 0 : i32
    %c0_i32_1 = arith.constant 0 : i32
    return %c0_i32, %c0_i32_0 : i32, i32
  }
  func.func @transform_2(%arg0: i32) -> (i32, i32) {
    %c0_i32 = arith.constant 0 : i32
    %c0_i32_0 = arith.constant 0 : i32
    %c0_i32_1 = arith.constant 0 : i32
    return %c0_i32, %c0_i32_0 : i32, i32
  }
  func.func @transform_3(%arg0: i32) -> (i32, i32) {
    %c0_i32 = arith.constant 0 : i32
    %c0_i32_0 = arith.constant 0 : i32
    %c0_i32_1 = arith.constant 0 : i32
    return %c0_i32, %c0_i32_0 : i32, i32
  }
  func.func @transform_4(%arg0: i32) -> (i32, i32) {
    %c0_i32 = arith.constant 0 : i32
    %c0_i32_0 = arith.constant 0 : i32
    %c0_i32_1 = arith.constant 0 : i32
    return %c0_i32, %c0_i32_0 : i32, i32
  }
  func.func @transform_5(%arg0: i32) -> (i32, i32) {
    %c0_i32 = arith.constant 0 : i32
    %c0_i32_0 = arith.constant 0 : i32
    %c0_i32_1 = arith.constant 0 : i32
    return %c0_i32, %c0_i32_0 : i32, i32
  }
  func.func @transform_6(%arg0: i32) -> (i32, i32) {
    %c0_i32 = arith.constant 0 : i32
    %c0_i32_0 = arith.constant 0 : i32
    %c0_i32_1 = arith.constant 0 : i32
    return %c0_i32, %c0_i32_0 : i32, i32
  }
  func.func @transform_7(%arg0: i32) -> (i32, i32) {
    %c0_i32 = arith.constant 0 : i32
    %c0_i32_0 = arith.constant 0 : i32
    return %arg0, %c0_i32 : i32, i32
  }
}

</mosaic_0001>

<llo_original>
// kernel: actor_critic_forward.1
$region0: #{actor_critic_forward.1}
  #allocation0 [shape = 'u32[]', space=smem, size = 0x4, offset = 0x4, fixed_abs, tag = 'smem constant byte address 0x4 - core index']
  #allocation1 [shape = 'u32[144,128]{1,0:T(1,128)}', space=vmem, size = 0x12000, scoped, tag = 'internal scratch']
  %s0 = inlined_call_operand.hbm [shape: f32[8,32], index: 0, kind: input, shape index: {}]
  %s1 = inlined_call_operand.hbm [shape: bf16[32,128], index: 1, kind: input, shape index: {}]
  %s2 = inlined_call_operand.vmem [shape: f32[1,128], index: 2, kind: input, shape index: {}]
  %s3 = inlined_call_operand.hbm [shape: bf16[128,128], index: 3, kind: input, shape index: {}]
  %s4 = inlined_call_operand.vmem [shape: f32[1,128], index: 4, kind: input, shape index: {}]
  %s5 = inlined_call_operand.hbm [shape: bf16[128,128], index: 5, kind: input, shape index: {}]
  %s6 = inlined_call_operand.vmem [shape: f32[1,128], index: 6, kind: input, shape index: {}]
  %s7 = inlined_call_operand.vmem [shape: bf16[8,128], index: 7, kind: output, shape index: {}]
  %s8 = sld [smem:[#allocation0]]
  $region54: #{actor_critic_forward.1} parent=0
    _
  %s10 = ssub.s32 1, %s8
  %s11 = scalar_select 0, %s10, %s8
  $region1: #{actor_critic_forward.1} parent=0
    #allocation2 [shape = 'u8[4096]{0}', space=vmem, size = 0x1000, scoped, tag = 'input window, operand 0, single buffered']
    #allocation3 [shape = 's32[1]{0}', space=sflag, size = 0x4, scoped, tag = 'scoped memory for actor_critic_forward.1']
    #allocation4 [shape = 'u8[8192]{0}', space=vmem, size = 0x2000, scoped, tag = 'input window, operand 1, single buffered']
    #allocation5 [shape = 's32[1]{0}', space=sflag, size = 0x4, scoped, tag = 'scoped memory for actor_critic_forward.1']
    #allocation6 [shape = 'u8[32768]{0}', space=vmem, size = 0x8000, scoped, tag = 'input window, operand 3, single buffered']
    #allocation7 [shape = 'u8[32768]{0}', space=vmem, size = 0x8000, scoped, tag = 'input window, operand 5, single buffered']
    #allocation8 [shape = 's32[1]{0}', space=sflag, size = 0x4, scoped, tag = 'scoped memory for actor_critic_forward.1']
    %12 = vsyncpa [#allocation3], 0
    %13 = vsyncpa [#allocation5], 0
    %14 = vsyncpa [#allocation8], 0
    // Predicated region
    $region2: #{actor_critic_forward.1} parent=1 // pred_check
      _
    $region3: #{actor_critic_forward.1} parent=1 // pred_check_branch
      %16 = sbr.rel (0) target = $region5
    $region4: #{actor_critic_forward.1} parent=1 // pred_region
      %s18 = ssub.s32 128, 128
      %19 = vsyncadd [#allocation3], %s18
      %s21 = sshll.u32 [#allocation2], 4
      %s22 = int_to_ptr.vmem [resolvable:$true] %s21
      %24 = dma.hbm_to_vmem [thread:$0]  %s0, 128, %s22, [#allocation3]
    $region5: #{actor_critic_forward.1} parent=1 // pred_fallthru
      _
    // Predicated region
    $region6: #{actor_critic_forward.1} parent=1 // pred_check
      _
    $region7: #{actor_critic_forward.1} parent=1 // pred_check_branch
      %26 = sbr.rel (0) target = $region9
    $region8: #{actor_critic_forward.1} parent=1 // pred_region
      %s28 = ssub.s32 256, 256
      %29 = vsyncadd [#allocation5], %s28
      %s30 = sshll.u32 [#allocation4], 4
      %s31 = int_to_ptr.vmem [resolvable:$true] %s30
      %36 = dma.hbm_to_vmem [thread:$0]  %s1, 256, %s31, [#allocation5], 64, 64, 4
    $region9: #{actor_critic_forward.1} parent=1 // pred_fallthru
      _
    // Predicated region
    $region10: #{actor_critic_forward.1} parent=1 // pred_check
      _
    $region11: #{actor_critic_forward.1} parent=1 // pred_check_branch
      %38 = sbr.rel (0) target = $region13
    $region12: #{actor_critic_forward.1} parent=1 // pred_region
      _
    $region13: #{actor_critic_forward.1} parent=1 // pred_fallthru
      _
    // Predicated region
    $region14: #{actor_critic_forward.1} parent=1 // pred_check
      _
    $region15: #{actor_critic_forward.1} parent=1 // pred_check_branch
      %40 = sbr.rel (0) target = $region17
    $region16: #{actor_critic_forward.1} parent=1 // pred_region
      %s42 = ssub.s32 1024, 1024
      %43 = vsyncadd [#allocation5], %s42
      %s44 = sshll.u32 [#allocation6], 4
      %s45 = int_to_ptr.vmem [resolvable:$true] %s44
      %50 = dma.hbm_to_vmem [thread:$0]  %s3, 1024, %s45, [#allocation5], 64, 64, 4
    $region17: #{actor_critic_forward.1} parent=1 // pred_fallthru
      _
    // Predicated region
    $region18: #{actor_critic_forward.1} parent=1 // pred_check
      _
    $region19: #{actor_critic_forward.1} parent=1 // pred_check_branch
      %52 = sbr.rel (0) target = $region21
    $region20: #{actor_critic_forward.1} parent=1 // pred_region
      _
    $region21: #{actor_critic_forward.1} parent=1 // pred_fallthru
      _
    // Predicated region
    $region22: #{actor_critic_forward.1} parent=1 // pred_check
      _
    $region23: #{actor_critic_forward.1} parent=1 // pred_check_branch
      %54 = sbr.rel (0) target = $region25
    $region24: #{actor_critic_forward.1} parent=1 // pred_region
      %s56 = ssub.s32 1024, 1024
      %57 = vsyncadd [#allocation8], %s56
      %s58 = sshll.u32 [#allocation7], 4
      %s59 = int_to_ptr.vmem [resolvable:$true] %s58
      %64 = dma.hbm_to_vmem [thread:$0]  %s5, 1024, %s59, [#allocation8], 64, 64, 4
    $region25: #{actor_critic_forward.1} parent=1 // pred_fallthru
      _
    // Predicated region
    $region26: #{actor_critic_forward.1} parent=1 // pred_check
      _
    $region27: #{actor_critic_forward.1} parent=1 // pred_check_branch
      %66 = sbr.rel (0) target = $region29
    $region28: #{actor_critic_forward.1} parent=1 // pred_region
      _
    $region29: #{actor_critic_forward.1} parent=1 // pred_fallthru
      _
    // Predicated region
    $region30: #{actor_critic_forward.1} parent=1 // pred_check
      _
    $region31: #{actor_critic_forward.1} parent=1 // pred_check_branch
      %68 = sbr.rel (0) target = $region33
    $region32: #{actor_critic_forward.1} parent=1 // pred_region
      %69 = dma.done [#allocation3], 128
    $region33: #{actor_critic_forward.1} parent=1 // pred_fallthru
      _
    // Predicated region
    $region34: #{actor_critic_forward.1} parent=1 // pred_check
      _
    $region35: #{actor_critic_forward.1} parent=1 // pred_check_branch
      %71 = sbr.rel (0) target = $region37
    $region36: #{actor_critic_forward.1} parent=1 // pred_region
      %72 = dma.done [#allocation5], 256
    $region37: #{actor_critic_forward.1} parent=1 // pred_fallthru
      _
    // Predicated region
    $region38: #{actor_critic_forward.1} parent=1 // pred_check
      _
    $region39: #{actor_critic_forward.1} parent=1 // pred_check_branch
      %74 = sbr.rel (0) target = $region41
    $region40: #{actor_critic_forward.1} parent=1 // pred_region
      %75 = dma.done [#allocation5], 1024
    $region41: #{actor_critic_forward.1} parent=1 // pred_fallthru
      _
    // Predicated region
    $region42: #{actor_critic_forward.1} parent=1 // pred_check
      _
    $region43: #{actor_critic_forward.1} parent=1 // pred_check_branch
      %77 = sbr.rel (0) target = $region45
    $region44: #{actor_critic_forward.1} parent=1 // pred_region
      %78 = dma.done [#allocation8], 1024
    $region45: #{actor_critic_forward.1} parent=1 // pred_fallthru
      _
    %v80 = vld [vmem:[#allocation2] sm:$0xff]
    %v81 = vpack.c.bf16 %v80, %v80
    %v82 = vld [vmem:[#allocation4] sm:$0xf]
    %v83 = vld [vmem:[#allocation4 + $0x4] sm:$0xf]
    %v84 = vld [vmem:[#allocation4 + $0x8] sm:$0xf]
    %v85 = vld [vmem:[#allocation4 + $0xc] sm:$0xf]
    %v86 = vld [vmem:[%s2] sm:$0x1]
    %v88 = vlaneseq
    %v89 = vshrl.u32 %v88, 7
    %v90 = vsub.s32 0, %v89
    %v91 = vrot.slane %v86, %v90
    %v97 = vunpack.c.l.b16 %v82
    %v98 = vunpack.c.l.b16 %v83
    %v99 = vunpack.c.l.b16 %v84
    %v100 = vunpack.c.l.b16 %v85
    %v101 = vpack.c.b16 %v98, %v97
    %v102 = vpack.c.b16 %v100, %v99
    %vm105 = vcmask 261120
    %v107 = vsel %vm105, %v81, 0
    %109 = vmatprep.subr.bf16.mxu0 0
    %110 = vmatpush1.bf16.msra.mxu0 %v101
    %111 = vmatprep.subr.bf16.mxu0 0
    %112 = vmatpush1.bf16.msra.mxu0 %v102
    %113 = vmatprep.subr.bf16.mxu0 0
    %114 = vmatpush1.bf16.msra.mxu0 0
    %115 = vmatprep.subr.bf16.mxu0 0
    %116 = vmatpush1.bf16.msra.mxu0 0
    %117 = vmatprep.subr.bf16.mxu0 0
    %118 = vmatpush1.bf16.msra.mxu0 0
    %119 = vmatprep.subr.bf16.mxu0 0
    %120 = vmatpush1.bf16.msra.mxu0 0
    %121 = vmatprep.subr.bf16.mxu0 0
    %122 = vmatpush1.bf16.msra.mxu0 0
    %123 = vmatprep.subr.bf16.mxu0 0
    %124 = vmatpush1.bf16.msra.mxu0 0
    %125 = vmatprep.subr.bf16.mxu0 0
    %126 = vmatpush1.bf16.msra.mxu0 0
    %127 = vmatprep.subr.bf16.mxu0 0
    %128 = vmatpush1.bf16.msra.mxu0 0
    %129 = vmatprep.subr.bf16.mxu0 0
    %130 = vmatpush1.bf16.msra.mxu0 0
    %131 = vmatprep.subr.bf16.mxu0 0
    %132 = vmatpush1.bf16.msra.mxu0 0
    %133 = vmatprep.subr.bf16.mxu0 0
    %134 = vmatpush1.bf16.msra.mxu0 0
    %135 = vmatprep.subr.bf16.mxu0 0
    %136 = vmatpush1.bf16.msra.mxu0 0
    %137 = vmatprep.subr.bf16.mxu0 0
    %138 = vmatpush1.bf16.msra.mxu0 0
    %139 = vmatprep.subr.bf16.mxu0 0
    %140 = vmatpush1.bf16.msra.mxu0 0
    %141 = vmatprep.mubr.bf16.mxu0 0
    %142 = vmatmul.mubr.bf16.gmra.mrb[0].mxu0 %v107
    %v143 = vpop.f32.mrb[0].mxu0
    %v144 = vadd.f32 %v91, %v143
    %v145 = vpop.f32.mrb[0].mxu0
    %v146 = vpop.f32.mrb[0].mxu0
    %v147 = vpop.f32.mrb[0].mxu0
    %148 = vdwg.mxu0
    %v149 = vtanh.pop %v144
    %v150 = vpack.c.bf16 %v149, %v149
    %v151 = vld [vmem:[#allocation6] sm:$0xf]
    %v152 = vld [vmem:[#allocation6 + $0x4] sm:$0xf]
    %v153 = vld [vmem:[#allocation6 + $0x8] sm:$0xf]
    %v154 = vld [vmem:[#allocation6 + $0xc] sm:$0xf]
    %v155 = vld [vmem:[#allocation6 + $0x10] sm:$0xf]
    %v156 = vld [vmem:[#allocation6 + $0x14] sm:$0xf]
    %v157 = vld [vmem:[#allocation6 + $0x18] sm:$0xf]
    %v158 = vld [vmem:[#allocation6 + $0x1c] sm:$0xf]
    %v159 = vld [vmem:[#allocation6 + $0x20] sm:$0xf]
    %v160 = vld [vmem:[#allocation6 + $0x24] sm:$0xf]
    %v161 = vld [vmem:[#allocation6 + $0x28] sm:$0xf]
    %v162 = vld [vmem:[#allocation6 + $0x2c] sm:$0xf]
    %v163 = vld [vmem:[#allocation6 + $0x30] sm:$0xf]
    %v164 = vld [vmem:[#allocation6 + $0x34] sm:$0xf]
    %v165 = vld [vmem:[#allocation6 + $0x38] sm:$0xf]
    %v166 = vld [vmem:[#allocation6 + $0x3c] sm:$0xf]
    %v167 = vld [vmem:[%s4] sm:$0x1]
    %v169 = vlaneseq
    %v170 = vshrl.u32 %v169, 7
    %v171 = vsub.s32 0, %v170
    %v172 = vrot.slane %v167, %v171
    %v190 = vunpack.c.l.b16 %v151
    %v191 = vunpack.c.l.b16 %v152
    %v192 = vunpack.c.l.b16 %v153
    %v193 = vunpack.c.l.b16 %v154
    %v194 = vunpack.c.l.b16 %v155
    %v195 = vunpack.c.l.b16 %v156
    %v196 = vunpack.c.l.b16 %v157
    %v197 = vunpack.c.l.b16 %v158
    %v198 = vunpack.c.l.b16 %v159
    %v199 = vunpack.c.l.b16 %v160
    %v200 = vunpack.c.l.b16 %v161
    %v201 = vunpack.c.l.b16 %v162
    %v202 = vunpack.c.l.b16 %v163
    %v203 = vunpack.c.l.b16 %v164
    %v204 = vunpack.c.l.b16 %v165
    %v205 = vunpack.c.l.b16 %v166
    %v206 = vpack.c.b16 %v191, %v190
    %v207 = vpack.c.b16 %v193, %v192
    %v208 = vpack.c.b16 %v195, %v194
    %v209 = vpack.c.b16 %v197, %v196
    %v210 = vpack.c.b16 %v199, %v198
    %v211 = vpack.c.b16 %v201, %v200
    %v212 = vpack.c.b16 %v203, %v202
    %v213 = vpack.c.b16 %v205, %v204
    %222 = vmatprep.subr.bf16.mxu0 0
    %223 = vmatpush1.bf16.msra.mxu0 %v206
    %224 = vmatprep.subr.bf16.mxu0 0
    %225 = vmatpush1.bf16.msra.mxu0 %v207
    %226 = vmatprep.subr.bf16.mxu0 0
    %227 = vmatpush1.bf16.msra.mxu0 %v208
    %228 = vmatprep.subr.bf16.mxu0 0
    %229 = vmatpush1.bf16.msra.mxu0 %v209
    %230 = vmatprep.subr.bf16.mxu0 0
    %231 = vmatpush1.bf16.msra.mxu0 %v210
    %232 = vmatprep.subr.bf16.mxu0 0
    %233 = vmatpush1.bf16.msra.mxu0 %v211
    %234 = vmatprep.subr.bf16.mxu0 0
    %235 = vmatpush1.bf16.msra.mxu0 %v212
    %236 = vmatprep.subr.bf16.mxu0 0
    %237 = vmatpush1.bf16.msra.mxu0 %v213
    %238 = vmatprep.subr.bf16.mxu0 0
    %239 = vmatpush1.bf16.msra.mxu0 0
    %240 = vmatprep.subr.bf16.mxu0 0
    %241 = vmatpush1.bf16.msra.mxu0 0
    %242 = vmatprep.subr.bf16.mxu0 0
    %243 = vmatpush1.bf16.msra.mxu0 0
    %244 = vmatprep.subr.bf16.mxu0 0
    %245 = vmatpush1.bf16.msra.mxu0 0
    %246 = vmatprep.subr.bf16.mxu0 0
    %247 = vmatpush1.bf16.msra.mxu0 0
    %248 = vmatprep.subr.bf16.mxu0 0
    %249 = vmatpush1.bf16.msra.mxu0 0
    %250 = vmatprep.subr.bf16.mxu0 0
    %251 = vmatpush1.bf16.msra.mxu0 0
    %252 = vmatprep.subr.bf16.mxu0 0
    %253 = vmatpush1.bf16.msra.mxu0 0
    %254 = vmatprep.mubr.bf16.mxu0 0
    %255 = vmatmul.mubr.bf16.gmra.mrb[0].mxu0 %v150
    %v256 = vpop.f32.mrb[0].mxu0
    %v257 = vadd.f32 %v172, %v256
    %v258 = vpop.f32.mrb[0].mxu0
    %v259 = vpop.f32.mrb[0].mxu0
    %v260 = vpop.f32.mrb[0].mxu0
    %261 = vdwg.mxu0
    %v262 = vtanh.pop %v257
    %v263 = vpack.c.bf16 %v262, %v262
    %v264 = vld [vmem:[#allocation7] sm:$0xf]
    %v265 = vld [vmem:[#allocation7 + $0x4] sm:$0xf]
    %v266 = vld [vmem:[#allocation7 + $0x8] sm:$0xf]
    %v267 = vld [vmem:[#allocation7 + $0xc] sm:$0xf]
    %v268 = vld [vmem:[#allocation7 + $0x10] sm:$0xf]
    %v269 = vld [vmem:[#allocation7 + $0x14] sm:$0xf]
    %v270 = vld [vmem:[#allocation7 + $0x18] sm:$0xf]
    %v271 = vld [vmem:[#allocation7 + $0x1c] sm:$0xf]
    %v272 = vld [vmem:[#allocation7 + $0x20] sm:$0xf]
    %v273 = vld [vmem:[#allocation7 + $0x24] sm:$0xf]
    %v274 = vld [vmem:[#allocation7 + $0x28] sm:$0xf]
    %v275 = vld [vmem:[#allocation7 + $0x2c] sm:$0xf]
    %v276 = vld [vmem:[#allocation7 + $0x30] sm:$0xf]
    %v277 = vld [vmem:[#allocation7 + $0x34] sm:$0xf]
    %v278 = vld [vmem:[#allocation7 + $0x38] sm:$0xf]
    %v279 = vld [vmem:[#allocation7 + $0x3c] sm:$0xf]
    %v280 = vld [vmem:[%s6] sm:$0x1]
    %v282 = vlaneseq
    %v283 = vshrl.u32 %v282, 7
    %v284 = vsub.s32 0, %v283
    %v285 = vrot.slane %v280, %v284
    %v303 = vunpack.c.l.b16 %v264
    %v304 = vunpack.c.l.b16 %v265
    %v305 = vunpack.c.l.b16 %v266
    %v306 = vunpack.c.l.b16 %v267
    %v307 = vunpack.c.l.b16 %v268
    %v308 = vunpack.c.l.b16 %v269
    %v309 = vunpack.c.l.b16 %v270
    %v310 = vunpack.c.l.b16 %v271
    %v311 = vunpack.c.l.b16 %v272
    %v312 = vunpack.c.l.b16 %v273
    %v313 = vunpack.c.l.b16 %v274
    %v314 = vunpack.c.l.b16 %v275
    %v315 = vunpack.c.l.b16 %v276
    %v316 = vunpack.c.l.b16 %v277
    %v317 = vunpack.c.l.b16 %v278
    %v318 = vunpack.c.l.b16 %v279
    %v319 = vpack.c.b16 %v304, %v303
    %v320 = vpack.c.b16 %v306, %v305
    %v321 = vpack.c.b16 %v308, %v307
    %v322 = vpack.c.b16 %v310, %v309
    %v323 = vpack.c.b16 %v312, %v311
    %v324 = vpack.c.b16 %v314, %v313
    %v325 = vpack.c.b16 %v316, %v315
    %v326 = vpack.c.b16 %v318, %v317
    %335 = vmatprep.subr.bf16.mxu0 0
    %336 = vmatpush1.bf16.msra.mxu0 %v319
    %337 = vmatprep.subr.bf16.mxu0 0
    %338 = vmatpush1.bf16.msra.mxu0 %v320
    %339 = vmatprep.subr.bf16.mxu0 0
    %340 = vmatpush1.bf16.msra.mxu0 %v321
    %341 = vmatprep.subr.bf16.mxu0 0
    %342 = vmatpush1.bf16.msra.mxu0 %v322
    %343 = vmatprep.subr.bf16.mxu0 0
    %344 = vmatpush1.bf16.msra.mxu0 %v323
    %345 = vmatprep.subr.bf16.mxu0 0
    %346 = vmatpush1.bf16.msra.mxu0 %v324
    %347 = vmatprep.subr.bf16.mxu0 0
    %348 = vmatpush1.bf16.msra.mxu0 %v325
    %349 = vmatprep.subr.bf16.mxu0 0
    %350 = vmatpush1.bf16.msra.mxu0 %v326
    %351 = vmatprep.subr.bf16.mxu0 0
    %352 = vmatpush1.bf16.msra.mxu0 0
    %353 = vmatprep.subr.bf16.mxu0 0
    %354 = vmatpush1.bf16.msra.mxu0 0
    %355 = vmatprep.subr.bf16.mxu0 0
    %356 = vmatpush1.bf16.msra.mxu0 0
    %357 = vmatprep.subr.bf16.mxu0 0
    %358 = vmatpush1.bf16.msra.mxu0 0
    %359 = vmatprep.subr.bf16.mxu0 0
    %360 = vmatpush1.bf16.msra.mxu0 0
    %361 = vmatprep.subr.bf16.mxu0 0
    %362 = vmatpush1.bf16.msra.mxu0 0
    %363 = vmatprep.subr.bf16.mxu0 0
    %364 = vmatpush1.bf16.msra.mxu0 0
    %365 = vmatprep.subr.bf16.mxu0 0
    %366 = vmatpush1.bf16.msra.mxu0 0
    %367 = vmatprep.mubr.bf16.mxu0 0
    %368 = vmatmul.mubr.bf16.gmra.mrb[0].mxu0 %v263
    %v369 = vpop.f32.mrb[0].mxu0
    %v370 = vadd.f32 %v285, %v369
    %v371 = vpop.f32.mrb[0].mxu0
    %v372 = vpop.f32.mrb[0].mxu0
    %v373 = vpop.f32.mrb[0].mxu0
    %374 = vdwg.mxu0
    %v375 = vlaneseq
    %v376 = vand.u32 %v375, 127
    %vm377 = vcmp.lt.s32.totalorder %v376, 8
    %v378 = vsel %vm377, %v370, -1e+30
    %379 = vmax.xlane.f32.xlu0 %v378
    %v380 = vpop.xlane.xlu0 %379
    %v381 = vsub.f32 %v378, %v380
    %v382 = vmul.f32 %v381, 1.442695
    %v383 = vpow.pop %v382
    %v384 = vsel %vm377, %v383, 0.0
    %385 = vadd.xlane.f32.xlu0 %v384
    %v386 = vpop.xlane.xlu0 %385
    %v387 = vlog2.pop %v386
    %v388 = vmul.f32 %v387, 0.6931472
    %v389 = vadd.f32 %v380, %v388
    %v390 = vsub.f32 %v370, %v389
    %v391 = vsel %vm377, %v390, %v370
    %v392 = vpack.c.bf16 %v391, %v391
    %393 = vst [vmem:[%s7] sm:$0xf] %v392
    // Predicated region
    $region46: #{actor_critic_forward.1} parent=1 // pred_check
      _
    $region47: #{actor_critic_forward.1} parent=1 // pred_check_branch
      %395 = sbr.rel (0) target = $region49
    $region48: #{actor_critic_forward.1} parent=1 // pred_region
      _
    $region49: #{actor_critic_forward.1} parent=1 // pred_fallthru
      _
    // Predicated region
    $region50: #{actor_critic_forward.1} parent=1 // pred_check
      _
    $region51: #{actor_critic_forward.1} parent=1 // pred_check_branch
      %397 = sbr.rel (0) target = $region53
    $region52: #{actor_critic_forward.1} parent=1 // pred_region
      _
    $region53: #{actor_critic_forward.1} parent=1 // pred_fallthru
      _
    %398 = vsyncpa [#allocation3], 1
    %399 = vsyncpa [#allocation5], 1
    %400 = vsyncpa [#allocation8], 1

</llo_original>
